<compile_context>
chip_gen: v7x
topology: tpu7x:2x2x1
jax: 0.10.0
libtpu: 0.0.40
codegen_flags: <defaults>
</compile_context>

<pallas_src>
import functools

import jax
import jax.numpy as jnp
from jax.experimental import pallas as pl
from jax.experimental.pallas import tpu as pltpu


def basemf_kernel(u_ref, v_ref, o_ref):
    # u_ref : VMEM [F_pad, TB]  gathered user embeddings (factors on sublanes,
    #                           batch on the 128-lane axis)
    # v_ref : VMEM [F_pad, TB]  gathered item embeddings, same layout
    # o_ref : VMEM f32[1, TB]   per-pair dot products for this batch tile
    u = u_ref[...].astype(jnp.float32)     # upcast before math (v5e has no bf16 VPU)
    v = v_ref[...].astype(jnp.float32)
    o_ref[...] = jnp.sum(u * v, axis=0, keepdims=True)   # VPU mul + XLU sublane reduce


def _vmem_budget_bytes():
    """Conservative VMEM budget for the double-buffered input tiles."""
    try:
        cap = pltpu.get_tpu_info().vmem_capacity_bytes
    except Exception:
        cap = 64 << 20  # v7x per-TC physical; most conservative assumption
    # Stay comfortably under the default scoped VMEM limit on every generation
    # (16 MiB on v5e, 32 MiB on v6e/v7x) so no vmem_limit_bytes bump is needed.
    return min(cap // 8, 12 << 20)


def _round_down(x, m):
    return max(m, (x // m) * m)


def basemf_forward(user_idx, item_idx, user_weight, item_weight,
                   *, in_dtype=jnp.bfloat16, tb=None):
    """preds[B] = sum(user_weight[user_idx] * item_weight[item_idx], axis=1)."""
    B = user_idx.shape[0]
    users, factors = user_weight.shape
    items, factors_i = item_weight.shape
    assert factors == factors_i
    assert item_idx.shape[0] == B

    dtype_bytes = jnp.dtype(in_dtype).itemsize
    sublane = 8 * (4 // dtype_bytes)                 # 8 for f32, 16 for bf16
    f_pad = pl.cdiv(factors, sublane) * sublane      # sublane-aligned factor dim
    bp128 = pl.cdiv(B, 128) * 128                    # batch rounded to lane tile

    if tb is None:
        # ~2 MiB of input per grid step to amortize fixed per-step overhead.
        target_in_bytes = 2 << 20
        tb = target_in_bytes // (2 * f_pad * dtype_bytes)
        # Cap by VMEM budget: 2 inputs x 2 pipeline buffers of (f_pad, tb).
        tb = min(tb, _vmem_budget_bytes() // (4 * f_pad * dtype_bytes))
        tb = _round_down(min(tb, bp128), 128)
        # Prefer >= 2 tiles so the "parallel" batch axis can shard across the
        # two TensorCores on v7x (no-op on single-TC v5e/v6e).
        if bp128 >= 256 and tb > bp128 // 2:
            tb = _round_down(bp128 // 2, 128)
    else:
        assert tb % 128 == 0
        tb = min(tb, bp128)

    n_tiles = pl.cdiv(B, tb)
    Bp = n_tiles * tb

    # Gather hoisted out of the kernel; with allow_input_fusion these producers
    # fuse into the pallas_call inputs (no extra HBM round-trip for (F, B)).
    u = jnp.take(user_weight, user_idx, axis=0).astype(in_dtype).T   # (F, B)
    v = jnp.take(item_weight, item_idx, axis=0).astype(in_dtype).T   # (F, B)
    pad = ((0, f_pad - factors), (0, Bp - B))
    if pad != ((0, 0), (0, 0)):
        u = jnp.pad(u, pad)   # zero rows/cols contribute 0 to the reduction
        v = jnp.pad(v, pad)

    cost = pl.CostEstimate(
        flops=2 * B * factors,
        transcendentals=0,
        bytes_accessed=2 * Bp * f_pad * dtype_bytes + Bp * 4,
    )

    grid_spec = pltpu.PrefetchScalarGridSpec(
        num_scalar_prefetch=0,
        grid=(n_tiles,),
        in_specs=[
            pl.BlockSpec((f_pad, tb), lambda i: (0, i)),
            pl.BlockSpec((f_pad, tb), lambda i: (0, i)),
        ],
        out_specs=pl.BlockSpec((1, tb), lambda i: (0, i)),
    )

    out = pl.pallas_call(
        basemf_kernel,
        out_shape=jax.ShapeDtypeStruct((1, Bp), jnp.float32),
        grid_spec=grid_spec,
        compiler_params=pltpu.CompilerParams(
            dimension_semantics=("parallel",),     # independent batch tiles
            allow_input_fusion=[True, True],       # fuse gather/transpose/pad in
        ),
        cost_estimate=cost,
    )(u, v)

    # Drop padding and squeeze -> [B], matching preds.squeeze() in the module.
    return out[0, :B]


if __name__ == "__main__":
    key = jax.random.PRNGKey(0)

    # --- Config 1: small, exact f32 path -----------------------------------
    users, items, factors, batch = 64, 16, 32, 8
    k_user, k_item, k_uidx, k_iidx = jax.random.split(key, 4)
    user_weight = jax.random.normal(k_user, (users, factors), dtype=jnp.float32)
    item_weight = jax.random.normal(k_item, (items, factors), dtype=jnp.float32)
    user_idx = jax.random.randint(k_uidx, (batch,), 0, users, dtype=jnp.int32)
    item_idx = jax.random.randint(k_iidx, (batch,), 0, items, dtype=jnp.int32)

    fwd_f32 = jax.jit(functools.partial(basemf_forward, in_dtype=jnp.float32))
    preds = jax.block_until_ready(fwd_f32(user_idx, item_idx, user_weight, item_weight))
    ref = jnp.sum(user_weight[user_idx] * item_weight[item_idx], axis=1)
    assert preds.shape == (batch,)
    assert jnp.allclose(preds, ref, atol=1e-5, rtol=1e-5)

    # --- Config 2: bf16 inputs, ragged F and B (exercise padding + tiling) --
    users2, items2, factors2, batch2 = 40, 24, 20, 300
    k_user2, k_item2, k_uidx2, k_iidx2 = jax.random.split(jax.random.PRNGKey(1), 4)
    user_weight2 = jax.random.normal(k_user2, (users2, factors2), dtype=jnp.float32)
    item_weight2 = jax.random.normal(k_item2, (items2, factors2), dtype=jnp.float32)
    user_idx2 = jax.random.randint(k_uidx2, (batch2,), 0, users2, dtype=jnp.int32)
    item_idx2 = jax.random.randint(k_iidx2, (batch2,), 0, items2, dtype=jnp.int32)

    fwd_bf16 = jax.jit(basemf_forward)   # default in_dtype=bf16
    preds2 = jax.block_until_ready(
        fwd_bf16(user_idx2, item_idx2, user_weight2, item_weight2))
    # Reference computed with the same bf16-cast inputs, f32 accumulation.
    uq = user_weight2[user_idx2].astype(jnp.bfloat16).astype(jnp.float32)
    iq = item_weight2[item_idx2].astype(jnp.bfloat16).astype(jnp.float32)
    ref2 = jnp.sum(uq * iq, axis=1)
    assert preds2.shape == (batch2,)
    assert jnp.allclose(preds2, ref2, atol=1e-4, rtol=1e-4)

    print("KERNEL_OK")
</pallas_src>

<mosaic_0001>
module attributes {stable_mosaic.version = 11 : i64} {
  func.func @basemf_kernel(%arg0: i32, %arg1: memref<32x128xf32, #tpu.memory_space<vmem>>, %arg2: memref<32x128xf32, #tpu.memory_space<vmem>>, %arg3: memref<1x128xf32, #tpu.memory_space<vmem>>) attributes {dimension_semantics = [#tpu.dimension_semantics<parallel>], iteration_bounds = array<i64: 1>, scalar_prefetch = 0 : i64, scratch_operands = 0 : i64, tpu.core_type = #tpu.core_type<tc>, window_params = [{transform_indices = @transform_0, window_bounds = array<i64: 32, 128>}, {transform_indices = @transform_1, window_bounds = array<i64: 32, 128>}, {transform_indices = @transform_2, window_bounds = array<i64: 1, 128>}]} {
    %c0 = arith.constant 0 : index
    %c0_0 = arith.constant 0 : index
    %0 = vector.load %arg1[%c0, %c0_0] : memref<32x128xf32, #tpu.memory_space<vmem>>, vector<32x128xf32>
    %c0_1 = arith.constant 0 : index
    %c0_2 = arith.constant 0 : index
    %1 = vector.load %arg2[%c0_1, %c0_2] : memref<32x128xf32, #tpu.memory_space<vmem>>, vector<32x128xf32>
    %2 = arith.mulf %0, %1 : vector<32x128xf32>
    %cst = arith.constant dense<0.000000e+00> : vector<128xf32>
    %3 = vector.multi_reduction <add>, %2, %cst [0] : vector<32x128xf32> to vector<128xf32>
    %4 = vector.shape_cast %3 : vector<128xf32> to vector<1x128xf32>
    %c0_3 = arith.constant 0 : index
    %c0_4 = arith.constant 0 : index
    %5 = vector.load %arg3[%c0_3, %c0_4] : memref<1x128xf32, #tpu.memory_space<vmem>>, vector<1x128xf32>
    tpu.vector_store %arg3[%c0_3, %c0_4], %4 {strides = array<i32>} : memref<1x128xf32, #tpu.memory_space<vmem>>, vector<1x128xf32>,
    return
  }
  func.func @transform_0(%arg0: i32) -> (i32, i32) {
    %c0_i32 = arith.constant 0 : i32
    %c0_i32_0 = arith.constant 0 : i32
    return %c0_i32, %arg0 : i32, i32
  }
  func.func @transform_1(%arg0: i32) -> (i32, i32) {
    %c0_i32 = arith.constant 0 : i32
    %c0_i32_0 = arith.constant 0 : i32
    return %c0_i32, %arg0 : i32, i32
  }
  func.func @transform_2(%arg0: i32) -> (i32, i32) {
    %c0_i32 = arith.constant 0 : i32
    %c0_i32_0 = arith.constant 0 : i32
    return %c0_i32, %arg0 : i32, i32
  }
}

</mosaic_0001>

<llo_original>
// kernel: basemf_forward.2
$region0: #{basemf_forward.2}
  #allocation0 [shape = 'u32[]', space=smem, size = 0x4, offset = 0x4, fixed_abs, tag = 'smem constant byte address 0x4 - core index']
  #allocation1 [shape = 'u32[144,128]{1,0:T(1,128)}', space=vmem, size = 0x12000, scoped, tag = 'internal scratch']
  #allocation2 [shape = 'u32[2048]{0}', space=vmem, size = 0x2000, scoped, tag = 'scoped memory for basemf_forward.2']
  #allocation3 [shape = 'u32[2048]{0}', space=vmem, size = 0x2000, scoped, tag = 'scoped memory for basemf_forward.2']
  #allocation4 [shape = 'u32[2048]{0}', space=vmem, size = 0x2000, scoped, tag = 'scoped memory for basemf_forward.2']
  #allocation5 [shape = 'u32[2048]{0}', space=vmem, size = 0x2000, scoped, tag = 'scoped memory for basemf_forward.2']
  #allocation6 [shape = 'u32[2048]{0}', space=vmem, size = 0x2000, scoped, tag = 'scoped memory for basemf_forward.2']
  #allocation7 [shape = 'u32[2048]{0}', space=vmem, size = 0x2000, scoped, tag = 'scoped memory for basemf_forward.2']
  #allocation8 [shape = 'u32[2048]{0}', space=vmem, size = 0x2000, scoped, tag = 'scoped memory for basemf_forward.2']
  #allocation9 [shape = 'u32[2048]{0}', space=vmem, size = 0x2000, scoped, tag = 'scoped memory for basemf_forward.2']
  #allocation10 [shape = 'u32[2048]{0}', space=vmem, size = 0x2000, scoped, tag = 'scoped memory for basemf_forward.2']
  #allocation11 [shape = 'u32[2048]{0}', space=vmem, size = 0x2000, scoped, tag = 'scoped memory for basemf_forward.2']
  %s0 = inlined_call_operand.vmem [shape: f32[32,8], index: 0, kind: input, shape index: {}]
  %s1 = inlined_call_operand.<no memory space> [shape: f32[], index: 1, kind: input, shape index: {}]
  %s2 = inlined_call_operand.vmem [shape: f32[32,8], index: 2, kind: input, shape index: {}]
  %s3 = inlined_call_operand.vmem [shape: f32[1,128], index: 3, kind: output, shape index: {}]
  %s4 = sld [smem:[#allocation0]]
  $region18: #{basemf_forward.2} parent=0
    _
  %s6 = ssub.s32 1, %s4
  %s7 = scalar_select 0, %s6, %s4
  %v8 = vstv %s1
  %v9 = vstv %s1
  $region1: #{basemf_forward.2} parent=0
    #allocation12 [shape = 'u8[16384]{0}', space=vmem, size = 0x4000, dematerialized = true, scoped, tag = 'FusionAdapter Buffer %fusion.2 = f32[32,128]{1,0:T(8,128)} fusion(%param_2.3, %param_1.15), kind=kLoop, calls=%fused_computation.6.clone, metadata={op_name="jit(basemf_forward)/jit(_pad)/pad" stack_frame_id=11}']
    #allocation13 [shape = 'u8[16384]{0}', space=vmem, size = 0x4000, dematerialized = true, scoped, tag = 'FusionAdapter Buffer %fusion.1 = f32[32,128]{1,0:T(8,128)} fusion(%param_0.12, %param_1.15), kind=kLoop, calls=%fused_computation.5.clone, metadata={op_name="jit(basemf_forward)/jit(_pad)/pad" stack_frame_id=12}']
    // Predicated region
    $region2: #{basemf_forward.2} parent=1 // pred_check
      _
    $region3: #{basemf_forward.2} parent=1 // pred_check_branch
      %11 = sbr.rel (0) target = $region5
    $region4: #{basemf_forward.2} parent=1 // pred_region
      _
    $region5: #{basemf_forward.2} parent=1 // pred_fallthru
      _
    // Predicated region
    $region6: #{basemf_forward.2} parent=1 // pred_check
      _
    $region7: #{basemf_forward.2} parent=1 // pred_check_branch
      %13 = sbr.rel (0) target = $region9
    $region8: #{basemf_forward.2} parent=1 // pred_region
      _
    $region9: #{basemf_forward.2} parent=1 // pred_fallthru
      _
    %v14 = vld [vmem:[%s2] sm:$0xff]
    %v15 = vlaneseq
    %v16 = vand.u32 %v15, 127
    %vm18 = vcmp.lt.s32.totalorder %v16, 8
    %v19 = vsel %vm18, %v14, %v8
    %21 = vst [vmem:[#allocation12] sm:$0xff] %v19
    %s22 = scalar_lea.vmem %s2, 8
    %v23 = vld [vmem:[%s22] sm:$0xff]
    %v24 = vlaneseq
    %v25 = vand.u32 %v24, 127
    %vm27 = vcmp.lt.s32.totalorder %v25, 8
    %v28 = vsel %vm27, %v23, %v8
    %s29 = scalar_lea.vmem [#allocation12], 8
    %31 = vst [vmem:[%s29] sm:$0xff] %v28
    %s32 = scalar_lea.vmem %s2, 16
    %v33 = vld [vmem:[%s32] sm:$0xff]
    %v34 = vlaneseq
    %v35 = vand.u32 %v34, 127
    %vm37 = vcmp.lt.s32.totalorder %v35, 8
    %v38 = vsel %vm37, %v33, %v8
    %s39 = scalar_lea.vmem [#allocation12], 16
    %41 = vst [vmem:[%s39] sm:$0xff] %v38
    %s42 = scalar_lea.vmem %s2, 24
    %v43 = vld [vmem:[%s42] sm:$0xff]
    %v44 = vlaneseq
    %v45 = vand.u32 %v44, 127
    %vm47 = vcmp.lt.s32.totalorder %v45, 8
    %v48 = vsel %vm47, %v43, %v8
    %s49 = scalar_lea.vmem [#allocation12], 24
    %51 = vst [vmem:[%s49] sm:$0xff] %v48
    %v52 = vld [vmem:[%s0] sm:$0xff]
    %v53 = vlaneseq
    %v54 = vand.u32 %v53, 127
    %vm56 = vcmp.lt.s32.totalorder %v54, 8
    %v57 = vsel %vm56, %v52, %v9
    %59 = vst [vmem:[#allocation13] sm:$0xff] %v57
    %s60 = scalar_lea.vmem %s0, 8
    %v61 = vld [vmem:[%s60] sm:$0xff]
    %v62 = vlaneseq
    %v63 = vand.u32 %v62, 127
    %vm65 = vcmp.lt.s32.totalorder %v63, 8
    %v66 = vsel %vm65, %v61, %v9
    %s67 = scalar_lea.vmem [#allocation13], 8
    %69 = vst [vmem:[%s67] sm:$0xff] %v66
    %s70 = scalar_lea.vmem %s0, 16
    %v71 = vld [vmem:[%s70] sm:$0xff]
    %v72 = vlaneseq
    %v73 = vand.u32 %v72, 127
    %vm75 = vcmp.lt.s32.totalorder %v73, 8
    %v76 = vsel %vm75, %v71, %v9
    %s77 = scalar_lea.vmem [#allocation13], 16
    %79 = vst [vmem:[%s77] sm:$0xff] %v76
    %s80 = scalar_lea.vmem %s0, 24
    %v81 = vld [vmem:[%s80] sm:$0xff]
    %v82 = vlaneseq
    %v83 = vand.u32 %v82, 127
    %vm85 = vcmp.lt.s32.totalorder %v83, 8
    %v86 = vsel %vm85, %v81, %v9
    %s87 = scalar_lea.vmem [#allocation13], 24
    %89 = vst [vmem:[%s87] sm:$0xff] %v86
    %v90 = vld [vmem:[#allocation12] sm:$0xff]
    %v91 = vld [vmem:[#allocation12 + $0x8] sm:$0xff]
    %v92 = vld [vmem:[#allocation12 + $0x10] sm:$0xff]
    %v93 = vld [vmem:[#allocation12 + $0x18] sm:$0xff]
    %v94 = vld [vmem:[#allocation13] sm:$0xff]
    %v95 = vld [vmem:[#allocation13 + $0x8] sm:$0xff]
    %v96 = vld [vmem:[#allocation13 + $0x10] sm:$0xff]
    %v97 = vld [vmem:[#allocation13 + $0x18] sm:$0xff]
    %v98 = vmul.f32 %v90, %v94
    %v99 = vmul.f32 %v91, %v95
    %v100 = vmul.f32 %v92, %v96
    %v101 = vmul.f32 %v93, %v97
    %v102 = vadd.f32 %v98, %v99
    %v103 = vadd.f32 %v102, %v100
    %v104 = vadd.f32 %v103, %v101
    %v105 = vrot.slane %v104, 4
    %v106 = vadd.f32 %v104, %v105
    %v107 = vrot.slane %v106, 2
    %v108 = vadd.f32 %v106, %v107
    %v109 = vrot.slane %v108, 1
    %v110 = vadd.f32 %v108, %v109
    %111 = vst [vmem:[%s3] sm:$0x1] %v110
    // Predicated region
    $region10: #{basemf_forward.2} parent=1 // pred_check
      _
    $region11: #{basemf_forward.2} parent=1 // pred_check_branch
      %113 = sbr.rel (0) target = $region13
    $region12: #{basemf_forward.2} parent=1 // pred_region
      _
    $region13: #{basemf_forward.2} parent=1 // pred_fallthru
      _
    // Predicated region
    $region14: #{basemf_forward.2} parent=1 // pred_check
      _
    $region15: #{basemf_forward.2} parent=1 // pred_check_branch
      %115 = sbr.rel (0) target = $region17
    $region16: #{basemf_forward.2} parent=1 // pred_region
      _
    $region17: #{basemf_forward.2} parent=1 // pred_fallthru
      _

</llo_original>
